<compile_context>
chip_gen: v5e
topology: v5e:2x2
jax: 0.10.0
libtpu: 0.0.40
codegen_flags: <defaults>
</compile_context>

<pallas_src>
import functools
import math

import jax
import jax.numpy as jnp
from jax.experimental import pallas as pl
from jax.experimental.pallas import tpu as pltpu


def _pick_time_tile(T: int, D: int, target_bytes: int = 2 << 20) -> int:
    """Largest 'nice' time tile: multiple of 8, divides T, ~target_bytes of f32."""
    if T % 8 != 0:
        return T  # full-extent block (still legal: equals the array dim)
    max_rows = max(8, target_bytes // (4 * max(D, 1)))
    for cand in (2048, 1024, 512, 256, 128, 64, 32, 16, 8):
        if cand <= max_rows and cand <= T and T % cand == 0:
            return cand
    return T


def _pe_kernel(div_ref, pe_ref, *, t_tile: int):
    """Build one (1, tT, D) tile of the positional-encoding table.

    posemb[t, d] = sin(t * div[d] + (d % 2) * pi/2)
                 = sin(t * div[d]) if d even else cos(t * div[d])
    """
    tT = pe_ref.shape[1]
    D = pe_ref.shape[2]
    t0 = pl.program_id(0) * t_tile
    pos = (jax.lax.broadcasted_iota(jnp.int32, (tT, D), 0) + t0).astype(jnp.float32)
    d_idx = jax.lax.broadcasted_iota(jnp.int32, (tT, D), 1)
    phase = (d_idx % 2).astype(jnp.float32) * (math.pi / 2.0)
    angle = pos * div_ref[...] + phase          # div_ref: (1, D) broadcasts over rows
    pe_ref[...] = jnp.sin(angle)[None, :, :]    # single transcendental stream


def _add_kernel(x_ref, pe_ref, o_ref, *, xscale: float):
    """out = x * sqrt(D) + posemb   (pure mem-bound elementwise add)."""
    o_ref[...] = x_ref[...] * xscale + pe_ref[...].astype(o_ref.dtype)


def positional_encoding(x: jnp.ndarray, emb_dim: int):
    """x: (B, T, D). Returns (out, posemb) with posemb shape (1, T, D) float32."""
    B, T, D = x.shape
    assert D == emb_dim and D % 2 == 0
    xscale = float(math.sqrt(emb_dim))

    tT = _pick_time_tile(T, D)
    num_t = pl.cdiv(T, tT)

    # div[d] = exp(-(2 * (d // 2)) * ln(10000) / D) — hoisted out of the kernel.
    d = jnp.arange(D, dtype=jnp.int32)
    div = jnp.exp((2 * (d // 2)).astype(jnp.float32) * (-(math.log(10000.0) / emb_dim)))
    div = div.reshape(1, D)

    # Pass 1: batch-independent posemb table, computed exactly once.
    posemb = pl.pallas_call(
        functools.partial(_pe_kernel, t_tile=tT),
        out_shape=jax.ShapeDtypeStruct((1, T, D), jnp.float32),
        grid=(num_t,),
        in_specs=[pl.BlockSpec((1, D), lambda t: (0, 0))],
        out_specs=pl.BlockSpec((1, tT, D), lambda t: (0, t, 0)),
        compiler_params=pltpu.CompilerParams(dimension_semantics=("parallel",)),
    )(div)

    # Pass 2: out = x * sqrt(D) + posemb.  Batch innermost so the posemb tile's block
    # index is unchanged across batch steps (no redundant re-fetch); both axes are
    # parallel so v7x megacore can shard the work across its two TensorCores.
    out = pl.pallas_call(
        functools.partial(_add_kernel, xscale=xscale),
        out_shape=jax.ShapeDtypeStruct((B, T, D), x.dtype),
        grid=(num_t, B),
        in_specs=[
            pl.BlockSpec((1, tT, D), lambda t, b: (b, t, 0)),
            pl.BlockSpec((1, tT, D), lambda t, b: (0, t, 0)),
        ],
        out_specs=pl.BlockSpec((1, tT, D), lambda t, b: (b, t, 0)),
        compiler_params=pltpu.CompilerParams(
            dimension_semantics=("parallel", "parallel")),
    )(x, posemb)

    return out, posemb


if __name__ == "__main__":
    B, T, D = 2, 8, 32
    key = jax.random.PRNGKey(0)
    x = jax.random.normal(key, (B, T, D), dtype=jnp.float32)

    out, posemb = positional_encoding(x, emb_dim=D)
    jax.block_until_ready((out, posemb))

    # Pure-JAX reference (same math as the PyTorch module).
    pos = jnp.arange(T, dtype=jnp.float32).reshape(1, T)
    div_term = jnp.exp(jnp.arange(0, D, 2, dtype=jnp.float32) * -(math.log(10000.0) / D))
    pe_ref = jnp.zeros((1, T, D), dtype=jnp.float32)
    pe_ref = pe_ref.at[:, :, 0::2].set(jnp.sin(pos[..., None] * div_term))
    pe_ref = pe_ref.at[:, :, 1::2].set(jnp.cos(pos[..., None] * div_term))
    out_ref = x * math.sqrt(D) + pe_ref

    assert jnp.allclose(posemb, pe_ref, atol=2e-5), "posemb mismatch"
    assert jnp.allclose(out, out_ref, atol=2e-5), "output mismatch"
    print("KERNEL_OK")
</pallas_src>

<mosaic_0001>
module attributes {stable_mosaic.version = 11 : i64} {
  func.func @_pe_kernel(%arg0: i32, %arg1: memref<1x32xf32, #tpu.memory_space<vmem>>, %arg2: memref<1x8x32xf32, #tpu.memory_space<vmem>>) attributes {dimension_semantics = [#tpu.dimension_semantics<parallel>], iteration_bounds = array<i64: 1>, scalar_prefetch = 0 : i64, scratch_operands = 0 : i64, tpu.core_type = #tpu.core_type<tc>, window_params = [{pipeline_mode = #tpu.pipeline_mode<synchronous>, transform_indices = @transform_0, window_bounds = array<i64: 1, 32>}, {transform_indices = @transform_1, window_bounds = array<i64: 1, 8, 32>}]} {
    %c8_i32 = arith.constant 8 : i32
    %0 = arith.muli %arg0, %c8_i32 : i32
    %1 = tpu.iota {dimensions = array<i32: 0>} : vector<8x32xi32>
    %2 = vector.broadcast %0 : i32 to vector<8x32xi32>
    %3 = arith.addi %1, %2 : vector<8x32xi32>
    %4 = arith.sitofp %3 : vector<8x32xi32> to vector<8x32xf32>
    %5 = tpu.iota {dimensions = array<i32: 1>} : vector<8x32xi32>
    %c2_i32 = arith.constant 2 : i32
    %c0_i32 = arith.constant 0 : i32
    %6 = arith.cmpi eq, %c2_i32, %c0_i32 : i32
    %c1_i32 = arith.constant 1 : i32
    %7 = arith.select %6, %c1_i32, %c2_i32 : i32
    %8 = vector.broadcast %7 : i32 to vector<8x32xi32>
    %9 = arith.remsi %5, %8 : vector<8x32xi32>
    %c0_i32_0 = arith.constant 0 : i32
    %10 = vector.broadcast %c0_i32_0 : i32 to vector<8x32xi32>
    %11 = arith.cmpi ne, %9, %10 : vector<8x32xi32>
    %c0_i32_1 = arith.constant 0 : i32
    %12 = vector.broadcast %c0_i32_1 : i32 to vector<8x32xi32>
    %13 = arith.cmpi slt, %9, %12 : vector<8x32xi32>
    %c0_i32_2 = arith.constant 0 : i32
    %14 = arith.cmpi slt, %7, %c0_i32_2 : i32
    %15 = vector.broadcast %14 : i1 to vector<8x32xi1>
    %16 = vector.broadcast %15 : vector<8x32xi1> to vector<8x32xi1>
    %17 = arith.xori %13, %16 : vector<8x32xi1>
    %18 = arith.andi %17, %11 : vector<8x32xi1>
    %19 = vector.broadcast %7 : i32 to vector<8x32xi32>
    %20 = arith.addi %9, %19 : vector<8x32xi32>
    %21 = arith.select %18, %20, %9 : vector<8x32xi1>, vector<8x32xi32>
    %22 = arith.sitofp %21 : vector<8x32xi32> to vector<8x32xf32>
    %cst = arith.constant 1.57079637 : f32
    %23 = vector.broadcast %cst : f32 to vector<8x32xf32>
    %24 = arith.mulf %22, %23 : vector<8x32xf32>
    %c0 = arith.constant 0 : index
    %c0_3 = arith.constant 0 : index
    %25 = vector.load %arg1[%c0, %c0_3] : memref<1x32xf32, #tpu.memory_space<vmem>>, vector<1x32xf32>
    %26 = vector.broadcast %25 : vector<1x32xf32> to vector<8x32xf32>
    %27 = arith.mulf %4, %26 : vector<8x32xf32>
    %28 = arith.addf %27, %24 : vector<8x32xf32>
    %29 = math.sin %28 : vector<8x32xf32>
    %30 = vector.shape_cast %29 : vector<8x32xf32> to vector<1x8x32xf32>
    %c0_4 = arith.constant 0 : index
    %c0_5 = arith.constant 0 : index
    %c0_6 = arith.constant 0 : index
    %31 = vector.load %arg2[%c0_4, %c0_5, %c0_6] : memref<1x8x32xf32, #tpu.memory_space<vmem>>, vector<1x8x32xf32>
    tpu.vector_store %arg2[%c0_4, %c0_5, %c0_6], %30 {strides = array<i32>} : memref<1x8x32xf32, #tpu.memory_space<vmem>>, vector<1x8x32xf32>,
    return
  }
  func.func @transform_0(%arg0: i32) -> (i32, i32) {
    %c0_i32 = arith.constant 0 : i32
    %c0_i32_0 = arith.constant 0 : i32
    %c0_i32_1 = arith.constant 0 : i32
    return %c0_i32, %c0_i32_0 : i32, i32
  }
  func.func @transform_1(%arg0: i32) -> (i32, i32, i32) {
    %c0_i32 = arith.constant 0 : i32
    %c0_i32_0 = arith.constant 0 : i32
    %c0_i32_1 = arith.constant 0 : i32
    return %c0_i32, %arg0, %c0_i32_0 : i32, i32, i32
  }
}

</mosaic_0001>

<llo_original>
// kernel: tpu_custom_call.1
$region0: #{tpu_custom_call.1}
  #allocation0 [shape = 'u32[]', space=smem, size = 0x4, offset = 0x4, fixed_abs, tag = 'smem constant byte address 0x4 - core index']
  #allocation1 [shape = 'u32[72,128]{1,0:T(1,128)}', space=vmem, size = 0x9000, scoped, tag = 'internal scratch']
  %s0 = inlined_call_operand.hbm [shape: f32[1,32], index: 0, kind: input, shape index: {}]
  %s1 = inlined_call_operand.hbm [shape: f32[1,8,32], index: 1, kind: output, shape index: {}]
  %s2 = sld [smem:[#allocation0]]
  $region18: #{tpu_custom_call.1} parent=0
    _
  %s4 = ssub.s32 1, %s2
  %s5 = scalar_select 0, %s4, %s2
  $region1: #{tpu_custom_call.1} parent=0
    #allocation2 [shape = 'u8[512]{0}', space=vmem, size = 0x400, scoped, tag = 'input window, operand 0, single buffered']
    #allocation3 [shape = 's32[1]{0}', space=sflag, size = 0x4, scoped, tag = 'scoped memory for tpu_custom_call.1']
    #allocation4 [shape = 's32[1]{0}', space=sflag, size = 0x4, scoped, tag = 'scoped memory for tpu_custom_call.1']
    #allocation5 [shape = 'u8[4096]{0}', space=vmem, size = 0x1000, scoped, tag = 'output window, operand 0, single buffered']
    %6 = vsyncpa [#allocation3], 0
    %7 = vsyncpa [#allocation4], 0
    // Predicated region
    $region2: #{tpu_custom_call.1} parent=1 // pred_check
      _
    $region3: #{tpu_custom_call.1} parent=1 // pred_check_branch
      %9 = sbr.rel (0) target = $region5
    $region4: #{tpu_custom_call.1} parent=1 // pred_region
      %11 = vsyncadd [#allocation3], 0
      %s13 = sshll.u32 %s0, 4
      %s14 = int_to_ptr.hbm [resolvable:$true] %s13
      %s15 = sshll.u32 [#allocation2], 4
      %s16 = int_to_ptr.vmem [resolvable:$true] %s15
      %18 = dma.hbm_to_vmem [thread:$0]  %s14, 16, %s16, [#allocation3]
    $region5: #{tpu_custom_call.1} parent=1 // pred_fallthru
      _
    // Predicated region
    $region6: #{tpu_custom_call.1} parent=1 // pred_check
      _
    $region7: #{tpu_custom_call.1} parent=1 // pred_check_branch
      %20 = sbr.rel (0) target = $region9
    $region8: #{tpu_custom_call.1} parent=1 // pred_region
      %22 = dma.done [#allocation3], 16
    $region9: #{tpu_custom_call.1} parent=1 // pred_fallthru
      _
    %s23 = smul.u32 0, 8
    %v24 = vlaneseq
    %v25 = vshrl.u32 %v24, 7
    %v26 = vstv %s23
    %v27 = vadd.s32 %v25, %v26
    %v28 = vcvt.s32.f32 %v27
    %v29 = vlaneseq
    %v30 = vand.u32 %v29, 127
    %vm31 = vcmp.lt.s32.totalorder %v30, 0
    %v32 = vsub.s32 0, %v30
    %v33 = vsel %vm31, %v32, %v30
    %v34 = vshrl.u32 %v33, 1
    %v35 = vand.u32 %v33, 1
    %v36 = vsub.s32 0, %v35
    %v37 = vsel %vm31, %v36, %v35
    %vm38 = vcmp.ne.s32.totalorder %v37, 0
    %vm39 = vcmp.lt.s32.totalorder %v37, 0
    %vm40 = vmand %vm39, %vm38
    %v41 = vadd.s32 %v37, 2
    %v42 = vsel %vm40, %v41, %v37
    %v43 = vcvt.s32.f32 %v42
    %v44 = vmul.f32 %v43, 1.5707964
    %v45 = vld [vmem:[#allocation2] sm:$0x1]
    %v47 = vperm.slane %v45, 0
    %v49 = vmul.f32 %v28, %v47
    %v50 = vadd.f32 %v49, %v44
    %v51 = vand.u32 2147483647, %v50
    %vm52 = vcmp.le.f32.partialorder %v51, 0.7853982
    %vm53 = vcmp.lt.s32.totalorder %v50, 0
    %v54 = vand.u32 %v50, 2139095040
    %v55 = vshrl.u32 %v54, 23
    %v56 = vsub.s32 %v55, 127
    %v57 = vand.u32 2147483647, %v50
    %v58 = vand.u32 %v57, 8388607
    %v59 = vor.u32 %v58, 8388608
    %v60 = vsub.s32 0, %v59
    %v61 = vadd.s32 %v56, 1
    %vm62 = vcmp.gt.s32.totalorder %v61, 0
    %v63 = vsel %vm62, %v61, 0
    %v64 = vshrl.u32 %v63, 5
    %v65 = vand.u32 %v63, 31
    %v66 = vsub.s32 32, %v65
    %v67 = vshrl.u32 683565275, %v66
    %v68 = vshll.u32 683565275, %v65
    %v69 = vshrl.u32 2475754826, %v66
    %v70 = vor.u32 %v68, %v69
    %v71 = vshll.u32 2475754826, %v65
    %v72 = vshrl.u32 2131351028, %v66
    %v73 = vor.u32 %v71, %v72
    %v74 = vshll.u32 2131351028, %v65
    %v75 = vshrl.u32 2102212464, %v66
    %v76 = vor.u32 %v74, %v75
    %v77 = vshll.u32 2102212464, %v65
    %v78 = vshrl.u32 920167782, %v66
    %v79 = vor.u32 %v77, %v78
    %v80 = vshll.u32 920167782, %v65
    %v81 = vshrl.u32 1326507024, %v66
    %v82 = vor.u32 %v80, %v81
    %vm83 = vcmp.lt.s32.totalorder %v64, 1
    %vm84 = vcmp.lt.s32.totalorder %v64, 2
    %vm85 = vcmp.lt.s32.totalorder %v64, 3
    %vm86 = vcmp.lt.s32.totalorder %v64, 4
    %v87 = vsel %vm83, %v67, %v70
    %v88 = vsel %vm86, %v76, 2102212464
    %v89 = vsel %vm85, %v73, %v88
    %v90 = vsel %vm84, %v87, %v89
    %v91 = vsel %vm83, %v70, %v73
    %v92 = vsel %vm86, %v79, 920167782
    %v93 = vsel %vm85, %v76, %v92
    %v94 = vsel %vm84, %v91, %v93
    %v95 = vsel %vm83, %v73, %v76
    %v96 = vsel %vm86, %v82, 1326507024
    %v97 = vsel %vm85, %v79, %v96
    %v98 = vsel %vm84, %v95, %v97
    %v99 = vshll.u32 %v59, 8
    %v100 = vand.u32 %v99, 65535
    %v101 = vshrl.u32 %v99, 16
    %v102 = vand.u32 %v98, 65535
    %v103 = vshrl.u32 %v98, 16
    %v104 = vmul.u32 %v100, %v102
    %v105 = vmul.u32 %v100, %v103
    %v106 = vmul.u32 %v101, %v102
    %v107 = vmul.u32 %v101, %v103
    %v108 = vshll.u32 %v105, 16
    %v109 = vshrl.u32 %v105, 16
    %v110 = vshll.u32 %v106, 16
    %v111 = vshrl.u32 %v106, 16
    %vm112 = vc.u32 %v104, %v108
    %v113 = vsel %vm112, 1, 0
    %v114 = vadd.s32 %v104, %v108
    %v115 = vadd.s32 %v107, %v113
    %vm116 = vc.u32 %v114, %v110
    %v117 = vsel %vm116, 1, 0
    %v118 = vadd.s32 %v114, %v110
    %v119 = vadd.s32 %v115, %v117
    %v120 = vadd.s32 %v119, %v109
    %v121 = vadd.s32 %v120, %v111
    %v122 = vand.u32 %v99, 65535
    %v123 = vshrl.u32 %v99, 16
    %v124 = vand.u32 %v94, 65535
    %v125 = vshrl.u32 %v94, 16
    %v126 = vmul.u32 %v122, %v124
    %v127 = vmul.u32 %v122, %v125
    %v128 = vmul.u32 %v123, %v124
    %v129 = vmul.u32 %v123, %v125
    %v130 = vshll.u32 %v127, 16
    %v131 = vshrl.u32 %v127, 16
    %v132 = vshll.u32 %v128, 16
    %v133 = vshrl.u32 %v128, 16
    %vm134 = vc.u32 %v126, %v130
    %v135 = vsel %vm134, 1, 0
    %v136 = vadd.s32 %v126, %v130
    %v137 = vadd.s32 %v129, %v135
    %vm138 = vc.u32 %v136, %v132
    %v139 = vsel %vm138, 1, 0
    %v140 = vadd.s32 %v136, %v132
    %v141 = vadd.s32 %v137, %v139
    %v142 = vadd.s32 %v141, %v131
    %v143 = vadd.s32 %v142, %v133
    %v144 = vmul.u32 %v99, %v90
    %v145 = vadd.s32 %v121, %v140
    %vm146 = vc.u32 %v121, %v140
    %v147 = vadd.s32 %v143, 1
    %v148 = vsel %vm146, %v147, %v143
    %v149 = vadd.s32 %v144, %v148
    %v150 = vadd.s32 %v149, 536870912
    %v151 = vshrl.u32 %v150, 30
    %v152 = vshll.u32 %v151, 30
    %v153 = vsub.s32 %v149, %v152
    %vm154 = vcmp.lt.s32.totalorder %v153, 0
    %v155 = vsub.s32 0, %v153
    %v156 = vsel %vm154, %v155, %v153
    %v157 = vclz %v156
    %v158 = vsub.s32 %v157, 2
    %vm159 = vcmp.gt.s32.totalorder 0, %v158
    %v160 = vsel %vm159, 0, %v158
    %v161 = vsub.s32 32, %v160
    %v162 = vshll.u32 %v153, %v160
    %v163 = vshrl.u32 %v145, %v161
    %v164 = vor.u32 %v162, %v163
    %v165 = vsub.s32 4294967266, %v160
    %v166 = vadd.s32 %v165, 127
    %v167 = vshll.u32 %v166, 23
    %v168 = vor.u32 4788187, %v167
    %v169 = vand.u32 2147483647, %v168
    %v171 = vcvt.s32.f32 %v164
    %v172 = vmul.f32 %v171, %v169
    %v173 = vxor.u32 %v172, 2147483648
    %v174 = vsel %vm53, %v173, %v172
    %v175 = vsub.s32 4, %v151
    %v176 = vsel %vm53, %v175, %v151
    %v177 = vsel %vm52, %v50, %v174
    %v178 = vsel %vm52, 0, %v176
    %v179 = vmul.f32 %v177, %v177
    %v180 = vmul.f32 %v179, -0.001358992
    %v181 = vadd.f32 %v180, 0.041655596
    %v182 = vmul.f32 %v179, %v181
    %v183 = vadd.f32 %v182, -0.4999988
    %v184 = vmul.f32 %v179, %v183
    %v185 = vadd.f32 1.0, %v184
    %v186 = vmul.f32 %v177, %v177
    %v187 = vmul.f32 %v186, -0.00019511016
    %v188 = vadd.f32 %v187, 0.008332121
    %v189 = vmul.f32 %v186, %v188
    %v190 = vadd.f32 %v189, -0.16666654
    %v191 = vmul.f32 %v186, %v190
    %v192 = vadd.f32 %v191, 1.0
    %v193 = vmul.f32 %v192, %v177
    %vm194 = vweird.f32 %v50
    %v195 = vadd.s32 %v178, 3
    %v196 = vand.u32 %v195, 3
    %vm197 = vcmp.lt.s32.totalorder %v196, 2
    %vm198 = vcmp.eq.s32.totalorder %v196, 0
    %v199 = vxor.u32 %v193, 2147483648
    %v200 = vsel %vm198, %v185, %v199
    %vm201 = vcmp.eq.s32.totalorder %v196, 2
    %v202 = vxor.u32 %v185, 2147483648
    %v203 = vsel %vm201, %v202, %v193
    %v204 = vsel %vm197, %v200, %v203
    %v205 = vsel %vm194, nan, %v204
    %vm206 = vcmask 261120
    %207 = vst.msk [vmem:[#allocation5] sm:$0xff] %vm206, %v205
    // Predicated region
    $region10: #{tpu_custom_call.1} parent=1 // pred_check
      _
    $region11: #{tpu_custom_call.1} parent=1 // pred_check_branch
      %209 = sbr.rel (0) target = $region13
    $region12: #{tpu_custom_call.1} parent=1 // pred_region
      %211 = vsyncadd [#allocation4], 0
      %s213 = sshll.u32 [#allocation5], 4
      %s214 = int_to_ptr.vmem [resolvable:$true] %s213
      %s215 = sshll.u32 %s1, 4
      %s216 = int_to_ptr.hbm [resolvable:$true] %s215
      %218 = dma.vmem_to_hbm [thread:$0]  %s214, 128, %s216, [#allocation4]
    $region13: #{tpu_custom_call.1} parent=1 // pred_fallthru
      _
    // Predicated region
    $region14: #{tpu_custom_call.1} parent=1 // pred_check
      _
    $region15: #{tpu_custom_call.1} parent=1 // pred_check_branch
      %220 = sbr.rel (0) target = $region17
    $region16: #{tpu_custom_call.1} parent=1 // pred_region
      %222 = dma.done [#allocation4], 128
    $region17: #{tpu_custom_call.1} parent=1 // pred_fallthru
      _
    %223 = vsyncpa [#allocation3], 1
    %224 = vsyncpa [#allocation4], 1

</llo_original>
